<compile_context>
chip_gen: v7x
topology: tpu7x:2x2x1
jax: 0.10.0
libtpu: 0.0.40
codegen_flags: <defaults>
</compile_context>

<pallas_src>
import functools
import math

import jax
import jax.numpy as jnp
from jax.experimental import pallas as pl
from jax.experimental.pallas import tpu as pltpu

GROUP = 16  # samples packed per physical row -> packed output last dim = 16*8 = 128 (lane-dense)


def _round_up(x, m):
    return ((x + m - 1) // m) * m


def _tpu_config():
    """Generation-aware knobs: layer-1 diagonal-block count, tanh dtype, tiling, VMEM limit."""
    try:
        kind = jax.devices()[0].device_kind.lower()
    except Exception:
        kind = ""
    old_gen = any(v in kind for v in ("v2", "v3", "v4", "v5"))  # 128x128-MXU gens, no bf16 EUP
    is_v7 = "v7" in kind
    if old_gen:
        # 4 x 128x128 layer-1 blocks match the 4x 128x128 MXU; keep tanh in f32.
        return dict(n_l1_blocks=4, bf16_tanh=False, max_tile_rows=2048,
                    min_grid=2, vmem_limit_bytes=40 * 1024 * 1024)
    if is_v7:
        # 64 MiB VMEM / 2 TCs: smaller tiles, >=4 grid steps, bf16 EUP, tighter VMEM limit.
        return dict(n_l1_blocks=2, bf16_tanh=True, max_tile_rows=1024,
                    min_grid=4, vmem_limit_bytes=24 * 1024 * 1024)
    # v6e default: 2 x 256x256 layer-1 blocks match the 2x 256x256 MXU.
    return dict(n_l1_blocks=2, bf16_tanh=True, max_tile_rows=2048,
                min_grid=2, vmem_limit_bytes=40 * 1024 * 1024)


# ----------------------------- Pallas kernel ---------------------------------
def mlp_kernel(x_ref, w0_ref, b0_ref, w1_ref, b1_ref, w2_ref, b2_ref, o_ref,
               *, n_l1_blocks, bf16_tanh):
    def act(z_f32):
        # tanh in bf16 on v6e/v7x (bf16 EUP at ~2x rate, half the VMEM temporaries);
        # f32 tanh then bf16 cast on older gens (no bf16 EUP path).
        if bf16_tanh:
            return jnp.tanh(z_f32.astype(jnp.bfloat16))
        return jnp.tanh(z_f32).astype(jnp.bfloat16)

    # Layer 0: (bt, G*in) @ (G*in, G*h1)
    x = x_ref[...]
    h = act(jnp.dot(x, w0_ref[...], preferred_element_type=jnp.float32) + b0_ref[...])

    # Layer 1: block-diagonal.  All diagonal blocks of kron(I_G, W1) are identical,
    # so one small (S, S) weight serves every lane-aligned slice of h.
    w1 = w1_ref[...]
    S = w1.shape[0]
    parts = [
        jnp.dot(h[:, k * S:(k + 1) * S], w1, preferred_element_type=jnp.float32)
        for k in range(n_l1_blocks)
    ]
    h = act(jnp.concatenate(parts, axis=1) + b1_ref[...])

    # Layer 2 (linear output): (bt, G*h2) @ (G*h2, G*out) -> 128-lane-dense output block
    o_ref[...] = (jnp.dot(h, w2_ref[...], preferred_element_type=jnp.float32)
                  + b2_ref[...]).astype(o_ref.dtype)


# ------------------------------ packing (done once) ---------------------------
def pack_params(params, *, group=GROUP, n_l1_blocks=2):
    """Block-diagonalize weights / tile biases so `group` samples share one packed row.
    Layer 1 is packed only as its (S, S) diagonal sub-block (all blocks identical)."""
    (w0, b0), (w1, b1), (w2, b2) = params
    assert group % n_l1_blocks == 0
    w0p = jnp.kron(jnp.eye(group, dtype=w0.dtype), w0).astype(jnp.bfloat16)
    w1p = jnp.kron(jnp.eye(group // n_l1_blocks, dtype=w1.dtype), w1).astype(jnp.bfloat16)
    w2p = jnp.kron(jnp.eye(group, dtype=w2.dtype), w2).astype(jnp.bfloat16)
    b0p = jnp.tile(b0, (1, group)).astype(jnp.float32)
    b1p = jnp.tile(b1, (1, group)).astype(jnp.float32)
    b2p = jnp.tile(b2, (1, group)).astype(jnp.float32)
    return (w0p, b0p, w1p, b1p, w2p, b2p)


# ------------------------------ forward wrapper --------------------------------
def mlp_forward(x, packed, *, group=GROUP, n_l1_blocks=2, bf16_tanh=True,
                max_tile_rows=2048, min_grid=2, vmem_limit_bytes=40 * 1024 * 1024):
    """x: (B, input_dim) f32.  packed: output of pack_params (built once at init)."""
    w0p, b0p, w1p, b1p, w2p, b2p = packed
    in_dim = w0p.shape[0] // group
    out_dim = w2p.shape[1] // group
    B = x.shape[0]

    # Pack `group` samples per physical row (pure row-major view); pad rows to 8 (sublanes only).
    rows = _round_up(pl.cdiv(B, group), 8)
    tile_rows = min(max_tile_rows, max(8, _round_up(pl.cdiv(rows, min_grid), 8)))
    Bp = rows * group
    xp = jnp.zeros((Bp, in_dim), jnp.bfloat16).at[:B].set(x.astype(jnp.bfloat16))
    xp = xp.reshape(rows, group * in_dim)

    def resident(arr):
        # full-extent block, same block every step -> stays resident in VMEM, no per-step DMA
        return pl.BlockSpec(arr.shape, lambda i: (0, 0))

    grid = (pl.cdiv(rows, tile_rows),)  # ragged last block handled by Pallas masking
    kernel = functools.partial(mlp_kernel, n_l1_blocks=n_l1_blocks, bf16_tanh=bf16_tanh)
    out_packed = pl.pallas_call(
        kernel,
        out_shape=jax.ShapeDtypeStruct((rows, group * out_dim), jnp.float32),
        grid_spec=pltpu.PrefetchScalarGridSpec(
            num_scalar_prefetch=0,
            grid=grid,
            in_specs=[
                pl.BlockSpec((tile_rows, group * in_dim), lambda i: (i, 0)),
                resident(w0p), resident(b0p),
                resident(w1p), resident(b1p),
                resident(w2p), resident(b2p),
            ],
            out_specs=pl.BlockSpec((tile_rows, group * out_dim), lambda i: (i, 0)),
        ),
        compiler_params=pltpu.CompilerParams(
            dimension_semantics=("parallel",),
            vmem_limit_bytes=vmem_limit_bytes,
        ),
    )(xp, w0p, b0p, w1p, b1p, w2p, b2p)

    # Unpack: (rows, group*out) -> (Bp, out) is a pure row-major view; drop padding.
    return out_packed.reshape(Bp, out_dim)[:B]


# ------------------------- deterministic init (xavier) -------------------------
def xavier_uniform(key, shape):
    fan_in, fan_out = shape
    bound = math.sqrt(6.0 / (fan_in + fan_out))
    return jax.random.uniform(key, shape, jnp.float32, -bound, bound)


def init_params(key, input_dim, h_layers):
    sizes = [input_dim] + list(h_layers)
    params = []
    for fin, fout in zip(sizes[:-1], sizes[1:]):
        kw, kb, key = jax.random.split(key, 3)
        w = xavier_uniform(kw, (fin, fout))
        b_bound = math.sqrt(6.0 / (fout + 1))  # xavier_uniform_(bias[None])
        b = jax.random.uniform(kb, (1, fout), jnp.float32, -b_bound, b_bound)
        params.append((w, b))
    return params


# ----------------------------------- main --------------------------------------
if __name__ == "__main__":
    # NeuralNetwork(inputs=[4], h_layers=[32, 32, 8],
    #               act_functions=[tanh, tanh], output_function=None)
    input_dim = 4
    h_layers = [32, 32, 8]
    batch = 256  # small, but enough packed rows for a multi-step grid

    key = jax.random.PRNGKey(0)
    kx, kp = jax.random.split(key)
    x = jax.random.normal(kx, (batch, input_dim), jnp.float32)
    params = init_params(kp, input_dim, h_layers)

    cfg = _tpu_config()
    # Weight packing hoisted out of the forward: done exactly once.
    packed = pack_params(params, group=GROUP, n_l1_blocks=cfg["n_l1_blocks"])
    fwd = jax.jit(functools.partial(mlp_forward, **cfg))
    out = jax.block_until_ready(fwd(x, packed))

    # Pure-JAX reference mirroring bf16 matmul inputs / f32 accumulation.
    # NOTE: bf16 MXU inputs (and bf16 tanh on v6e/v7x) mean results match f32 PyTorch
    # only within ~1e-2 relative; this is the accepted contract here.
    def c(a):
        return a.astype(jnp.bfloat16).astype(jnp.float32)

    (w0, b0), (w1, b1), (w2, b2) = params
    h = jnp.tanh(c(x) @ c(w0) + b0)
    h = jnp.tanh(c(h) @ c(w1) + b1)
    ref = c(h) @ c(w2) + b2

    assert out.shape == (batch, h_layers[-1])
    err = float(jnp.max(jnp.abs(out - ref)))
    assert jnp.allclose(out, ref, atol=3e-2, rtol=3e-2), err
    print("KERNEL_OK")
</pallas_src>

<mosaic_0001>
module attributes {stable_mosaic.version = 11 : i64} {
  func.func @mlp_kernel(%arg0: i32, %arg1: memref<8x64xbf16, #tpu.memory_space<vmem>>, %arg2: memref<64x512xbf16, #tpu.memory_space<vmem>>, %arg3: memref<1x512xf32, #tpu.memory_space<vmem>>, %arg4: memref<256x256xbf16, #tpu.memory_space<vmem>>, %arg5: memref<1x512xf32, #tpu.memory_space<vmem>>, %arg6: memref<512x128xbf16, #tpu.memory_space<vmem>>, %arg7: memref<1x128xf32, #tpu.memory_space<vmem>>, %arg8: memref<8x128xf32, #tpu.memory_space<vmem>>) attributes {dimension_semantics = [#tpu.dimension_semantics<parallel>], iteration_bounds = array<i64: 2>, scalar_prefetch = 0 : i64, scratch_operands = 0 : i64, tpu.core_type = #tpu.core_type<tc>, window_params = [{transform_indices = @transform_0, window_bounds = array<i64: 8, 64>}, {pipeline_mode = #tpu.pipeline_mode<synchronous>, transform_indices = @transform_1, window_bounds = array<i64: 64, 512>}, {pipeline_mode = #tpu.pipeline_mode<synchronous>, transform_indices = @transform_2, window_bounds = array<i64: 1, 512>}, {pipeline_mode = #tpu.pipeline_mode<synchronous>, transform_indices = @transform_3, window_bounds = array<i64: 256, 256>}, {pipeline_mode = #tpu.pipeline_mode<synchronous>, transform_indices = @transform_4, window_bounds = array<i64: 1, 512>}, {pipeline_mode = #tpu.pipeline_mode<synchronous>, transform_indices = @transform_5, window_bounds = array<i64: 512, 128>}, {pipeline_mode = #tpu.pipeline_mode<synchronous>, transform_indices = @transform_6, window_bounds = array<i64: 1, 128>}, {transform_indices = @transform_7, window_bounds = array<i64: 8, 128>}]} {
    %c0 = arith.constant 0 : index
    %c0_0 = arith.constant 0 : index
    %0 = vector.load %arg1[%c0, %c0_0] : memref<8x64xbf16, #tpu.memory_space<vmem>>, vector<8x64xbf16>
    %c0_1 = arith.constant 0 : index
    %c0_2 = arith.constant 0 : index
    %1 = vector.load %arg2[%c0_1, %c0_2] : memref<64x512xbf16, #tpu.memory_space<vmem>>, vector<64x512xbf16>
    %cst = arith.constant dense<0.000000e+00> : vector<8x512xf32>
    %2 = tpu.matmul %0, %1, %cst {dimension_numbers = #tpu.dot_dimension_numbers<[1], [0], [0], [1], [0, 0, 1, 1], [], []>} : vector<8x64xbf16>, vector<64x512xbf16>, vector<8x512xf32> -> vector<8x512xf32>
    %c0_3 = arith.constant 0 : index
    %c0_4 = arith.constant 0 : index
    %3 = vector.load %arg3[%c0_3, %c0_4] : memref<1x512xf32, #tpu.memory_space<vmem>>, vector<1x512xf32>
    %4 = vector.broadcast %3 : vector<1x512xf32> to vector<8x512xf32>
    %5 = arith.addf %2, %4 : vector<8x512xf32>
    %6 = arith.truncf %5 : vector<8x512xf32> to vector<8x512xbf16>
    %7 = math.tanh %6 : vector<8x512xbf16>
    %c0_5 = arith.constant 0 : index
    %c0_6 = arith.constant 0 : index
    %8 = vector.load %arg4[%c0_5, %c0_6] : memref<256x256xbf16, #tpu.memory_space<vmem>>, vector<256x256xbf16>
    %9 = vector.extract_strided_slice %7 {offsets = [0, 0], sizes = [8, 256], strides = [1, 1]} : vector<8x512xbf16> to vector<8x256xbf16>
    %cst_7 = arith.constant dense<0.000000e+00> : vector<8x256xf32>
    %10 = tpu.matmul %9, %8, %cst_7 {dimension_numbers = #tpu.dot_dimension_numbers<[1], [0], [0], [1], [0, 0, 1, 1], [], []>} : vector<8x256xbf16>, vector<256x256xbf16>, vector<8x256xf32> -> vector<8x256xf32>
    %11 = vector.extract_strided_slice %7 {offsets = [0, 256], sizes = [8, 256], strides = [1, 1]} : vector<8x512xbf16> to vector<8x256xbf16>
    %cst_8 = arith.constant dense<0.000000e+00> : vector<8x256xf32>
    %12 = tpu.matmul %11, %8, %cst_8 {dimension_numbers = #tpu.dot_dimension_numbers<[1], [0], [0], [1], [0, 0, 1, 1], [], []>} : vector<8x256xbf16>, vector<256x256xbf16>, vector<8x256xf32> -> vector<8x256xf32>
    %13 = tpu.concatenate %10, %12 in 1 : vector<8x256xf32>, vector<8x256xf32> -> vector<8x512xf32>
    %c0_9 = arith.constant 0 : index
    %c0_10 = arith.constant 0 : index
    %14 = vector.load %arg5[%c0_9, %c0_10] : memref<1x512xf32, #tpu.memory_space<vmem>>, vector<1x512xf32>
    %15 = vector.broadcast %14 : vector<1x512xf32> to vector<8x512xf32>
    %16 = arith.addf %13, %15 : vector<8x512xf32>
    %17 = arith.truncf %16 : vector<8x512xf32> to vector<8x512xbf16>
    %18 = math.tanh %17 : vector<8x512xbf16>
    %c0_11 = arith.constant 0 : index
    %c0_12 = arith.constant 0 : index
    %19 = vector.load %arg6[%c0_11, %c0_12] : memref<512x128xbf16, #tpu.memory_space<vmem>>, vector<512x128xbf16>
    %cst_13 = arith.constant dense<0.000000e+00> : vector<8x128xf32>
    %20 = tpu.matmul %18, %19, %cst_13 {dimension_numbers = #tpu.dot_dimension_numbers<[1], [0], [0], [1], [0, 0, 1, 1], [], []>} : vector<8x512xbf16>, vector<512x128xbf16>, vector<8x128xf32> -> vector<8x128xf32>
    %c0_14 = arith.constant 0 : index
    %c0_15 = arith.constant 0 : index
    %21 = vector.load %arg7[%c0_14, %c0_15] : memref<1x128xf32, #tpu.memory_space<vmem>>, vector<1x128xf32>
    %22 = vector.broadcast %21 : vector<1x128xf32> to vector<8x128xf32>
    %23 = arith.addf %20, %22 : vector<8x128xf32>
    %c0_16 = arith.constant 0 : index
    %c0_17 = arith.constant 0 : index
    %24 = vector.load %arg8[%c0_16, %c0_17] : memref<8x128xf32, #tpu.memory_space<vmem>>, vector<8x128xf32>
    tpu.vector_store %arg8[%c0_16, %c0_17], %23 {strides = array<i32>} : memref<8x128xf32, #tpu.memory_space<vmem>>, vector<8x128xf32>,
    return
  }
  func.func @transform_0(%arg0: i32) -> (i32, i32) {
    %c0_i32 = arith.constant 0 : i32
    %c0_i32_0 = arith.constant 0 : i32
    return %arg0, %c0_i32 : i32, i32
  }
  func.func @transform_1(%arg0: i32) -> (i32, i32) {
    %c0_i32 = arith.constant 0 : i32
    %c0_i32_0 = arith.constant 0 : i32
    %c0_i32_1 = arith.constant 0 : i32
    return %c0_i32, %c0_i32_0 : i32, i32
  }
  func.func @transform_2(%arg0: i32) -> (i32, i32) {
    %c0_i32 = arith.constant 0 : i32
    %c0_i32_0 = arith.constant 0 : i32
    %c0_i32_1 = arith.constant 0 : i32
    return %c0_i32, %c0_i32_0 : i32, i32
  }
  func.func @transform_3(%arg0: i32) -> (i32, i32) {
    %c0_i32 = arith.constant 0 : i32
    %c0_i32_0 = arith.constant 0 : i32
    %c0_i32_1 = arith.constant 0 : i32
    return %c0_i32, %c0_i32_0 : i32, i32
  }
  func.func @transform_4(%arg0: i32) -> (i32, i32) {
    %c0_i32 = arith.constant 0 : i32
    %c0_i32_0 = arith.constant 0 : i32
    %c0_i32_1 = arith.constant 0 : i32
    return %c0_i32, %c0_i32_0 : i32, i32
  }
  func.func @transform_5(%arg0: i32) -> (i32, i32) {
    %c0_i32 = arith.constant 0 : i32
    %c0_i32_0 = arith.constant 0 : i32
    %c0_i32_1 = arith.constant 0 : i32
    return %c0_i32, %c0_i32_0 : i32, i32
  }
  func.func @transform_6(%arg0: i32) -> (i32, i32) {
    %c0_i32 = arith.constant 0 : i32
    %c0_i32_0 = arith.constant 0 : i32
    %c0_i32_1 = arith.constant 0 : i32
    return %c0_i32, %c0_i32_0 : i32, i32
  }
  func.func @transform_7(%arg0: i32) -> (i32, i32) {
    %c0_i32 = arith.constant 0 : i32
    %c0_i32_0 = arith.constant 0 : i32
    return %arg0, %c0_i32 : i32, i32
  }
}

</mosaic_0001>

<llo_original>
// kernel: mlp_forward.1
$region0: #{mlp_forward.1}
  #allocation0 [shape = 'u32[]', space=smem, size = 0x4, offset = 0x4, fixed_abs, tag = 'smem constant byte address 0x4 - core index']
  #allocation1 [shape = 'u32[144,128]{1,0:T(1,128)}', space=vmem, size = 0x12000, scoped, tag = 'internal scratch']
  %s0 = inlined_call_operand.vmem [shape: bf16[16,64], index: 0, kind: input, shape index: {}]
  %s1 = inlined_call_operand.hbm [shape: bf16[64,512], index: 1, kind: input, shape index: {}]
  %s2 = inlined_call_operand.vmem [shape: f32[1,512], index: 2, kind: input, shape index: {}]
  %s3 = inlined_call_operand.vmem [shape: bf16[256,256], index: 3, kind: input, shape index: {}]
  %s4 = inlined_call_operand.vmem [shape: f32[1,512], index: 4, kind: input, shape index: {}]
  %s5 = inlined_call_operand.hbm [shape: bf16[512,128], index: 5, kind: input, shape index: {}]
  %s6 = inlined_call_operand.vmem [shape: f32[1,128], index: 6, kind: input, shape index: {}]
  %s7 = inlined_call_operand.vmem [shape: f32[16,128], index: 7, kind: output, shape index: {}]
  %s8 = sld [smem:[#allocation0]]
  $region69: #{mlp_forward.1} parent=0
    _
  %s10 = ssub.s32 1, %s8
  %s11 = scalar_select 0, %s10, %s8
  $region1: #{mlp_forward.1} parent=0
    #allocation2 [shape = 'u8[65536]{0}', space=vmem, size = 0x10000, scoped, tag = 'input window, operand 1, single buffered']
    #allocation3 [shape = 's32[2]{0}', space=sflag, size = 0x8, scoped, tag = 'scoped memory for mlp_forward.1']
    #allocation4 [shape = 'u8[131072]{0}', space=vmem, size = 0x20000, scoped, tag = 'input window, operand 5, single buffered']
    #allocation5 [shape = 's32[1]{0}', space=sflag, size = 0x4, scoped, tag = 'scoped memory for mlp_forward.1']
    %12 = vsyncpa [#allocation3], 0
    %13 = vsyncpa [#allocation5], 0
    loop: start=0, step=1, limit=4
    $region2: #{mlp_forward.1} parent=1 // loop_pre_header
      _
    $region3: #{mlp_forward.1} parent=1 // loop_header
      %s15 = sphi 0, %s19
      %p16 = scmp.ge.s32.totalorder %s15, 4
      %s25 = sphi 0, %s27
      %s28 = sphi 0, %s25
      %s29 = sphi 0, %s28
      %s45 = sphi 0, %s29
      %s49 = sphi 0, %s49
      %s51 = sphi 0, %s49
      %s52 = sphi 0, %s51
      %s66 = sphi 0, %s52
      %s70 = sphi 0, %s70
      %s72 = sphi 0, %s70
      %s73 = sphi 0, %s72
      %s87 = sphi 0, %s73
      %s91 = sphi 0, %s91
      %s93 = sphi 0, %s91
      %s94 = sphi 0, %s93
      %s108 = sphi 0, %s94
      %s112 = sphi 0, %s112
      %s114 = sphi 0, %s112
      %s115 = sphi 0, %s114
      %s129 = sphi 0, %s115
      %s133 = sphi 0, %s133
      %s135 = sphi 0, %s133
      %s136 = sphi 0, %s135
      %s150 = sphi 0, %s136
      %s154 = sphi 0, %s154
      %s156 = sphi 0, %s154
      %s157 = sphi 0, %s156
      %s171 = sphi 0, %s157
      %s177 = sphi 0, %s179
      %s180 = sphi 0, %s177
      %s181 = sphi 0, %s180
      %s197 = sphi 0, %s181
    $region4: #{mlp_forward.1} parent=1 // loop_header_branch
      %18 = sbr.rel (%p16) target = $region8
    $region5: #{mlp_forward.1} parent=1 // loop_body
      %s20 = ssub.s32 %s15, 1
      %s21 = ssub.s32 %s15, 2
      %s22 = sadd.s32 %s15, 1
      %s23 = ssub.s32 %s15, %s22
      %p24 = scmp.eq.s32.totalorder %s23, 0
      %s26 = sadd.s32 %s25, 1
      %s27 = scalar_select %p24, %s25, %s26
      %p30 = pneg %p24
      %p31 = scmp.eq.s32.totalorder %s15, 1
      %p32 = por %p30, %p31
      %p33 = scmp.ne.s32.totalorder %s25, %s28
      %p34 = scmp.eq.s32.totalorder %s15, 0
      %p35 = por %p33, %p34
      %p36 = scmp.ne.s32.totalorder %s25, %s28
      %p37 = scmp.eq.s32.totalorder %s20, 1
      %p38 = por %p36, %p37
      %p39 = scmp.ne.s32.totalorder %s28, %s29
      %p40 = scmp.eq.s32.totalorder %s20, 0
      %p41 = por %p39, %p40
      %p42 = scmp.ne.s32.totalorder %s28, %s29
      %p43 = scmp.eq.s32.totalorder %s21, 1
      %p44 = por %p42, %p43
      %p46 = scmp.ne.s32.totalorder %s29, %s45
      %p47 = scmp.eq.s32.totalorder %s21, 0
      %p48 = por %p46, %p47
      %s50 = sadd.s32 %s49, 1
      %p53 = scmp.eq.s32.totalorder %s15, 1
      %p54 = scmp.ne.s32.totalorder %s49, %s51
      %p55 = scmp.eq.s32.totalorder %s15, 0
      %p56 = por %p54, %p55
      %p57 = scmp.ne.s32.totalorder %s49, %s51
      %p58 = scmp.eq.s32.totalorder %s20, 1
      %p59 = por %p57, %p58
      %p60 = scmp.ne.s32.totalorder %s51, %s52
      %p61 = scmp.eq.s32.totalorder %s20, 0
      %p62 = por %p60, %p61
      %p63 = scmp.ne.s32.totalorder %s51, %s52
      %p64 = scmp.eq.s32.totalorder %s21, 1
      %p65 = por %p63, %p64
      %p67 = scmp.ne.s32.totalorder %s52, %s66
      %p68 = scmp.eq.s32.totalorder %s21, 0
      %p69 = por %p67, %p68
      %s71 = sadd.s32 %s70, 1
      %p74 = scmp.eq.s32.totalorder %s15, 1
      %p75 = scmp.ne.s32.totalorder %s70, %s72
      %p76 = scmp.eq.s32.totalorder %s15, 0
      %p77 = por %p75, %p76
      %p78 = scmp.ne.s32.totalorder %s70, %s72
      %p79 = scmp.eq.s32.totalorder %s20, 1
      %p80 = por %p78, %p79
      %p81 = scmp.ne.s32.totalorder %s72, %s73
      %p82 = scmp.eq.s32.totalorder %s20, 0
      %p83 = por %p81, %p82
      %p84 = scmp.ne.s32.totalorder %s72, %s73
      %p85 = scmp.eq.s32.totalorder %s21, 1
      %p86 = por %p84, %p85
      %p88 = scmp.ne.s32.totalorder %s73, %s87
      %p89 = scmp.eq.s32.totalorder %s21, 0
      %p90 = por %p88, %p89
      %s92 = sadd.s32 %s91, 1
      %p95 = scmp.eq.s32.totalorder %s15, 1
      %p96 = scmp.ne.s32.totalorder %s91, %s93
      %p97 = scmp.eq.s32.totalorder %s15, 0
      %p98 = por %p96, %p97
      %p99 = scmp.ne.s32.totalorder %s91, %s93
      %p100 = scmp.eq.s32.totalorder %s20, 1
      %p101 = por %p99, %p100
      %p102 = scmp.ne.s32.totalorder %s93, %s94
      %p103 = scmp.eq.s32.totalorder %s20, 0
      %p104 = por %p102, %p103
      %p105 = scmp.ne.s32.totalorder %s93, %s94
      %p106 = scmp.eq.s32.totalorder %s21, 1
      %p107 = por %p105, %p106
      %p109 = scmp.ne.s32.totalorder %s94, %s108
      %p110 = scmp.eq.s32.totalorder %s21, 0
      %p111 = por %p109, %p110
      %s113 = sadd.s32 %s112, 1
      %p116 = scmp.eq.s32.totalorder %s15, 1
      %p117 = scmp.ne.s32.totalorder %s112, %s114
      %p118 = scmp.eq.s32.totalorder %s15, 0
      %p119 = por %p117, %p118
      %p120 = scmp.ne.s32.totalorder %s112, %s114
      %p121 = scmp.eq.s32.totalorder %s20, 1
      %p122 = por %p120, %p121
      %p123 = scmp.ne.s32.totalorder %s114, %s115
      %p124 = scmp.eq.s32.totalorder %s20, 0
      %p125 = por %p123, %p124
      %p126 = scmp.ne.s32.totalorder %s114, %s115
      %p127 = scmp.eq.s32.totalorder %s21, 1
      %p128 = por %p126, %p127
      %p130 = scmp.ne.s32.totalorder %s115, %s129
      %p131 = scmp.eq.s32.totalorder %s21, 0
      %p132 = por %p130, %p131
      %s134 = sadd.s32 %s133, 1
      %p137 = scmp.eq.s32.totalorder %s15, 1
      %p138 = scmp.ne.s32.totalorder %s133, %s135
      %p139 = scmp.eq.s32.totalorder %s15, 0
      %p140 = por %p138, %p139
      %p141 = scmp.ne.s32.totalorder %s133, %s135
      %p142 = scmp.eq.s32.totalorder %s20, 1
      %p143 = por %p141, %p142
      %p144 = scmp.ne.s32.totalorder %s135, %s136
      %p145 = scmp.eq.s32.totalorder %s20, 0
      %p146 = por %p144, %p145
      %p147 = scmp.ne.s32.totalorder %s135, %s136
      %p148 = scmp.eq.s32.totalorder %s21, 1
      %p149 = por %p147, %p148
      %p151 = scmp.ne.s32.totalorder %s136, %s150
      %p152 = scmp.eq.s32.totalorder %s21, 0
      %p153 = por %p151, %p152
      %s155 = sadd.s32 %s154, 1
      %p158 = scmp.eq.s32.totalorder %s15, 1
      %p159 = scmp.ne.s32.totalorder %s154, %s156
      %p160 = scmp.eq.s32.totalorder %s15, 0
      %p161 = por %p159, %p160
      %p162 = scmp.ne.s32.totalorder %s154, %s156
      %p163 = scmp.eq.s32.totalorder %s20, 1
      %p164 = por %p162, %p163
      %p165 = scmp.ne.s32.totalorder %s156, %s157
      %p166 = scmp.eq.s32.totalorder %s20, 0
      %p167 = por %p165, %p166
      %p168 = scmp.ne.s32.totalorder %s156, %s157
      %p169 = scmp.eq.s32.totalorder %s21, 1
      %p170 = por %p168, %p169
      %p172 = scmp.ne.s32.totalorder %s157, %s171
      %p173 = scmp.eq.s32.totalorder %s21, 0
      %p174 = por %p172, %p173
      %s175 = ssub.s32 %s15, %s22
      %p176 = scmp.eq.s32.totalorder %s175, 0
      %s178 = sadd.s32 %s177, 1
      %s179 = scalar_select %p176, %s177, %s178
      %p182 = pneg %p176
      %p183 = scmp.eq.s32.totalorder %s15, 1
      %p184 = por %p182, %p183
      %p185 = scmp.ne.s32.totalorder %s177, %s180
      %p186 = scmp.eq.s32.totalorder %s15, 0
      %p187 = por %p185, %p186
      %p188 = scmp.ne.s32.totalorder %s177, %s180
      %p189 = scmp.eq.s32.totalorder %s20, 1
      %p190 = por %p188, %p189
      %p191 = scmp.ne.s32.totalorder %s180, %s181
      %p192 = scmp.eq.s32.totalorder %s20, 0
      %p193 = por %p191, %p192
      %p194 = scmp.ne.s32.totalorder %s180, %s181
      %p195 = scmp.eq.s32.totalorder %s21, 1
      %p196 = por %p194, %p195
      %p198 = scmp.ne.s32.totalorder %s181, %s197
      %p199 = scmp.eq.s32.totalorder %s21, 0
      %p200 = por %p198, %p199
      %p201 = scmp.le.s32.totalorder 1, %s15
      %p202 = scmp.lt.s32.totalorder %s15, 3
      %p203 = pnand %p201, %p202
      %p204 = pneg %p203
      // Predicated region
      $region9: #{mlp_forward.1} parent=5 // pred_check
        _
      $region10: #{mlp_forward.1} parent=5 // pred_check_branch
        %206 = sbr.rel (%p203) target = $region12
      $region11: #{mlp_forward.1} parent=5 // pred_region
        %s207 = ssub.s32 %s15, 1
        // Predicated region
        $region13: #{mlp_forward.1} parent=11 // pred_check
          %p208 = pneg %p62
        $region14: #{mlp_forward.1} parent=11 // pred_check_branch
          %210 = sbr.rel (%p208) target = $region16
        $region15: #{mlp_forward.1} parent=11 // pred_region
          %s212 = ssub.s32 2048, 2048
          %213 = vsyncadd [#allocation3], %s212
          %s214 = sshll.u32 [#allocation2], 4
          %s215 = int_to_ptr.vmem [resolvable:$true] %s214
          %220 = dma.hbm_to_vmem [thread:$0]  %s1, 2048, %s215, [#allocation3], 256, 256, 16
        $region16: #{mlp_forward.1} parent=11 // pred_fallthru
          _
        // Predicated region
        $region17: #{mlp_forward.1} parent=11 // pred_check
          %p221 = pneg %p83
        $region18: #{mlp_forward.1} parent=11 // pred_check_branch
          %223 = sbr.rel (%p221) target = $region20
        $region19: #{mlp_forward.1} parent=11 // pred_region
          _
        $region20: #{mlp_forward.1} parent=11 // pred_fallthru
          _
        // Predicated region
        $region21: #{mlp_forward.1} parent=11 // pred_check
          %p224 = pneg %p104
        $region22: #{mlp_forward.1} parent=11 // pred_check_branch
          %226 = sbr.rel (%p224) target = $region24
        $region23: #{mlp_forward.1} parent=11 // pred_region
          _
        $region24: #{mlp_forward.1} parent=11 // pred_fallthru
          _
        // Predicated region
        $region25: #{mlp_forward.1} parent=11 // pred_check
          %p227 = pneg %p125
        $region26: #{mlp_forward.1} parent=11 // pred_check_branch
          %229 = sbr.rel (%p227) target = $region28
        $region27: #{mlp_forward.1} parent=11 // pred_region
          _
        $region28: #{mlp_forward.1} parent=11 // pred_fallthru
          _
        // Predicated region
        $region29: #{mlp_forward.1} parent=11 // pred_check
          %p230 = pneg %p146
        $region30: #{mlp_forward.1} parent=11 // pred_check_branch
          %232 = sbr.rel (%p230) target = $region32
        $region31: #{mlp_forward.1} parent=11 // pred_region
          %s234 = ssub.s32 4096, 4096
          %235 = vsyncadd [#allocation5], %s234
          %s236 = sshll.u32 [#allocation4], 4
          %s237 = int_to_ptr.vmem [resolvable:$true] %s236
          %242 = dma.hbm_to_vmem [thread:$0]  %s5, 4096, %s237, [#allocation5], 64, 64, 4
        $region32: #{mlp_forward.1} parent=11 // pred_fallthru
          _
        // Predicated region
        $region33: #{mlp_forward.1} parent=11 // pred_check
          %p243 = pneg %p167
        $region34: #{mlp_forward.1} parent=11 // pred_check_branch
          %245 = sbr.rel (%p243) target = $region36
        $region35: #{mlp_forward.1} parent=11 // pred_region
          _
        $region36: #{mlp_forward.1} parent=11 // pred_fallthru
          _
      $region12: #{mlp_forward.1} parent=5 // pred_fallthru
        _
      %p246 = scmp.lt.s32.totalorder %s15, 2
      // Predicated region
      $region37: #{mlp_forward.1} parent=5 // pred_check
        %p247 = pneg %p246
      $region38: #{mlp_forward.1} parent=5 // pred_check_branch
        %249 = sbr.rel (%p247) target = $region40
      $region39: #{mlp_forward.1} parent=5 // pred_region
        // Predicated region
        $region41: #{mlp_forward.1} parent=39 // pred_check
          %p250 = pneg %p35
        $region42: #{mlp_forward.1} parent=39 // pred_check_branch
          %252 = sbr.rel (%p250) target = $region44
        $region43: #{mlp_forward.1} parent=39 // pred_region
          %p253 = scmp.lt.s32.totalorder %s15, 1
          %s254 = scalar_select %p253, %s15, 1
          %s255 = smul.addr %s254, 4
          %s256 = scalar_lea.vmem %s0, %s255
        $region44: #{mlp_forward.1} parent=39 // pred_fallthru
          _
      $region40: #{mlp_forward.1} parent=5 // pred_fallthru
        _
      %p257 = scmp.le.s32.totalorder 1, %s15
      %p258 = scmp.lt.s32.totalorder %s15, 3
      %p259 = pnand %p257, %p258
      %p260 = pneg %p259
      // Predicated region
      $region45: #{mlp_forward.1} parent=5 // pred_check
        _
      $region46: #{mlp_forward.1} parent=5 // pred_check_branch
        %262 = sbr.rel (%p259) target = $region48
      $region47: #{mlp_forward.1} parent=5 // pred_region
        %s263 = ssub.s32 %s15, 1
        // Predicated region
        $region49: #{mlp_forward.1} parent=47 // pred_check
          %p264 = pneg %p62
        $region50: #{mlp_forward.1} parent=47 // pred_check_branch
          %266 = sbr.rel (%p264) target = $region52
        $region51: #{mlp_forward.1} parent=47 // pred_region
          %267 = dma.done [#allocation3], 2048
        $region52: #{mlp_forward.1} parent=47 // pred_fallthru
          _
        // Predicated region
        $region53: #{mlp_forward.1} parent=47 // pred_check
          %p268 = pneg %p146
        $region54: #{mlp_forward.1} parent=47 // pred_check_branch
          %270 = sbr.rel (%p268) target = $region56
        $region55: #{mlp_forward.1} parent=47 // pred_region
          %271 = dma.done [#allocation5], 4096
        $region56: #{mlp_forward.1} parent=47 // pred_fallthru
          _
        %p272 = scmp.lt.s32.totalorder %s20, 1
        %s273 = scalar_select %p272, %s20, 1
        %s274 = smul.addr %s273, 4
        %s275 = scalar_lea.vmem %s0, %s274
        %p276 = pneg %p41
        %p277 = pneg %p38
        %p278 = pneg %p62
        %p279 = pneg %p59
        %p280 = pneg %p83
        %p281 = pneg %p80
        %p282 = pneg %p104
        %p283 = pneg %p101
        %p284 = pneg %p125
        %p285 = pneg %p122
        %p286 = pneg %p146
        %p287 = pneg %p143
        %p288 = pneg %p167
        %p289 = pneg %p164
        %p290 = pneg %p193
        %p291 = pneg %p190
        %p292 = scmp.lt.s32.totalorder %s20, 1
        %s293 = scalar_select %p292, %s20, 1
        %s294 = smul.addr %s293, 8
        %s295 = scalar_lea.vmem %s7, %s294
        %p296 = scmp.lt.s32.totalorder %s20, 1
        %s297 = scalar_select %p296, %s20, 1
        %s298 = smul.addr %s297, 4
        %s299 = scalar_lea.vmem %s0, %s298
        %p300 = scmp.lt.s32.totalorder %s20, 1
        %s301 = scalar_select %p300, %s20, 1
        %s302 = smul.addr %s301, 8
        %s303 = scalar_lea.vmem %s7, %s302
        %v305 = vld [vmem:[%s299] sm:$0xf]
        %v306 = vld [vmem:[#allocation2] sm:$0xff]
        %v307 = vld [vmem:[#allocation2 + $0x8] sm:$0xff]
        %v308 = vld [vmem:[#allocation2 + $0x10] sm:$0xff]
        %v309 = vld [vmem:[#allocation2 + $0x18] sm:$0xff]
        %v310 = vld [vmem:[#allocation2 + $0x20] sm:$0xff]
        %v311 = vld [vmem:[#allocation2 + $0x28] sm:$0xff]
        %v312 = vld [vmem:[#allocation2 + $0x30] sm:$0xff]
        %v313 = vld [vmem:[#allocation2 + $0x38] sm:$0xff]
        %v314 = vld [vmem:[#allocation2 + $0x40] sm:$0xff]
        %v315 = vld [vmem:[#allocation2 + $0x48] sm:$0xff]
        %v316 = vld [vmem:[#allocation2 + $0x50] sm:$0xff]
        %v317 = vld [vmem:[#allocation2 + $0x58] sm:$0xff]
        %v318 = vld [vmem:[#allocation2 + $0x60] sm:$0xff]
        %v319 = vld [vmem:[#allocation2 + $0x68] sm:$0xff]
        %v320 = vld [vmem:[#allocation2 + $0x70] sm:$0xff]
        %v321 = vld [vmem:[#allocation2 + $0x78] sm:$0xff]
        %v322 = vld [vmem:[%s2] sm:$0xf]
        %v324 = vlaneseq
        %v325 = vshrl.u32 %v324, 7
        %v326 = vsub.s32 0, %v325
        %v327 = vrot.slane %v322, %v326
        %v328 = vlaneseq
        %v329 = vshrl.u32 %v328, 7
        %v330 = vsub.s32 1, %v329
        %v331 = vrot.slane %v322, %v330
        %v332 = vlaneseq
        %v333 = vshrl.u32 %v332, 7
        %v334 = vsub.s32 2, %v333
        %v335 = vrot.slane %v322, %v334
        %v336 = vlaneseq
        %v337 = vshrl.u32 %v336, 7
        %v338 = vsub.s32 3, %v337
        %v339 = vrot.slane %v322, %v338
        %v360 = vunpack.c.l.b16 %v306
        %v361 = vunpack.c.h.b16 %v306
        %v362 = vunpack.c.l.b16 %v307
        %v363 = vunpack.c.h.b16 %v307
        %v364 = vunpack.c.l.b16 %v308
        %v365 = vunpack.c.h.b16 %v308
        %v366 = vunpack.c.l.b16 %v309
        %v367 = vunpack.c.h.b16 %v309
        %v368 = vunpack.c.l.b16 %v310
        %v369 = vunpack.c.h.b16 %v310
        %v370 = vunpack.c.l.b16 %v311
        %v371 = vunpack.c.h.b16 %v311
        %v372 = vunpack.c.l.b16 %v312
        %v373 = vunpack.c.h.b16 %v312
        %v374 = vunpack.c.l.b16 %v313
        %v375 = vunpack.c.h.b16 %v313
        %v376 = vunpack.c.l.b16 %v314
        %v377 = vunpack.c.h.b16 %v314
        %v378 = vunpack.c.l.b16 %v315
        %v379 = vunpack.c.h.b16 %v315
        %v380 = vunpack.c.l.b16 %v316
        %v381 = vunpack.c.h.b16 %v316
        %v382 = vunpack.c.l.b16 %v317
        %v383 = vunpack.c.h.b16 %v317
        %v384 = vunpack.c.l.b16 %v318
        %v385 = vunpack.c.h.b16 %v318
        %v386 = vunpack.c.l.b16 %v319
        %v387 = vunpack.c.h.b16 %v319
        %v388 = vunpack.c.l.b16 %v320
        %v389 = vunpack.c.h.b16 %v320
        %v390 = vunpack.c.l.b16 %v321
        %v391 = vunpack.c.h.b16 %v321
        %v392 = vpack.c.b16 %v364, %v360
        %v393 = vpack.c.b16 %v365, %v361
        %v394 = vpack.c.b16 %v366, %v362
        %v395 = vpack.c.b16 %v367, %v363
        %v396 = vpack.c.b16 %v372, %v368
        %v397 = vpack.c.b16 %v373, %v369
        %v398 = vpack.c.b16 %v374, %v370
        %v399 = vpack.c.b16 %v375, %v371
        %v400 = vpack.c.b16 %v380, %v376
        %v401 = vpack.c.b16 %v381, %v377
        %v402 = vpack.c.b16 %v382, %v378
        %v403 = vpack.c.b16 %v383, %v379
        %v404 = vpack.c.b16 %v388, %v384
        %v405 = vpack.c.b16 %v389, %v385
        %v406 = vpack.c.b16 %v390, %v386
        %v407 = vpack.c.b16 %v391, %v387
        %vm424 = vcmask 523264
        %v426 = vsel %vm424, %v305, 0
        %428 = vmatprep.subr.bf16.mxu0 %v393
        %429 = vmatpush1.bf16.msra.mxu0 %v392
        %430 = vmatprep.subr.bf16.mxu0 %v397
        %431 = vmatpush1.bf16.msra.mxu0 %v396
        %432 = vmatprep.subr.bf16.mxu0 %v401
        %433 = vmatpush1.bf16.msra.mxu0 %v400
        %434 = vmatprep.subr.bf16.mxu0 %v405
        %435 = vmatpush1.bf16.msra.mxu0 %v404
        %436 = vmatprep.subr.bf16.mxu0 0
        %437 = vmatpush1.bf16.msra.mxu0 0
        %438 = vmatprep.subr.bf16.mxu0 0
        %439 = vmatpush1.bf16.msra.mxu0 0
        %440 = vmatprep.subr.bf16.mxu0 0
        %441 = vmatpush1.bf16.msra.mxu0 0
        %442 = vmatprep.subr.bf16.mxu0 0
        %443 = vmatpush1.bf16.msra.mxu0 0
        %444 = vmatprep.subr.bf16.mxu0 0
        %445 = vmatpush1.bf16.msra.mxu0 0
        %446 = vmatprep.subr.bf16.mxu0 0
        %447 = vmatpush1.bf16.msra.mxu0 0
        %448 = vmatprep.subr.bf16.mxu0 0
        %449 = vmatpush1.bf16.msra.mxu0 0
        %450 = vmatprep.subr.bf16.mxu0 0
        %451 = vmatpush1.bf16.msra.mxu0 0
        %452 = vmatprep.subr.bf16.mxu0 0
        %453 = vmatpush1.bf16.msra.mxu0 0
        %454 = vmatprep.subr.bf16.mxu0 0
        %455 = vmatpush1.bf16.msra.mxu0 0
        %456 = vmatprep.subr.bf16.mxu0 0
        %457 = vmatpush1.bf16.msra.mxu0 0
        %458 = vmatprep.subr.bf16.mxu0 0
        %459 = vmatpush1.bf16.msra.mxu0 0
        %460 = vmatprep.mubr.bf16.mxu0 0
        %461 = vmatmul.mubr.bf16.gmra.mrb[0].mxu0 %v426
        %v462 = vpop.f32.mrb[0].mxu0
        %v463 = vadd.f32 %v327, %v462
        %v464 = vpop.f32.mrb[0].mxu0
        %v465 = vadd.f32 %v331, %v464
        %v466 = vpop.f32.mrb[0].mxu0
        %v467 = vpop.f32.mrb[0].mxu0
        %468 = vdwg.mxu0
        %469 = vmatprep.subr.bf16.mxu0 %v395
        %470 = vmatpush1.bf16.msra.mxu0 %v394
        %471 = vmatprep.subr.bf16.mxu0 %v399
        %472 = vmatpush1.bf16.msra.mxu0 %v398
        %473 = vmatprep.subr.bf16.mxu0 %v403
        %474 = vmatpush1.bf16.msra.mxu0 %v402
        %475 = vmatprep.subr.bf16.mxu0 %v407
        %476 = vmatpush1.bf16.msra.mxu0 %v406
        %477 = vmatprep.subr.bf16.mxu0 0
        %478 = vmatpush1.bf16.msra.mxu0 0
        %479 = vmatprep.subr.bf16.mxu0 0
        %480 = vmatpush1.bf16.msra.mxu0 0
        %481 = vmatprep.subr.bf16.mxu0 0
        %482 = vmatpush1.bf16.msra.mxu0 0
        %483 = vmatprep.subr.bf16.mxu0 0
        %484 = vmatpush1.bf16.msra.mxu0 0
        %485 = vmatprep.subr.bf16.mxu0 0
        %486 = vmatpush1.bf16.msra.mxu0 0
        %487 = vmatprep.subr.bf16.mxu0 0
        %488 = vmatpush1.bf16.msra.mxu0 0
        %489 = vmatprep.subr.bf16.mxu0 0
        %490 = vmatpush1.bf16.msra.mxu0 0
        %491 = vmatprep.subr.bf16.mxu0 0
        %492 = vmatpush1.bf16.msra.mxu0 0
        %493 = vmatprep.subr.bf16.mxu0 0
        %494 = vmatpush1.bf16.msra.mxu0 0
        %495 = vmatprep.subr.bf16.mxu0 0
        %496 = vmatpush1.bf16.msra.mxu0 0
        %497 = vmatprep.subr.bf16.mxu0 0
        %498 = vmatpush1.bf16.msra.mxu0 0
        %499 = vmatprep.subr.bf16.mxu0 0
        %500 = vmatpush1.bf16.msra.mxu0 0
        %501 = vmatprep.mubr.bf16.mxu0 0
        %502 = vmatmul.mubr.bf16.gmra.mrb[0].mxu0 %v426
        %v503 = vpop.f32.mrb[0].mxu0
        %v504 = vadd.f32 %v335, %v503
        %v505 = vpop.f32.mrb[0].mxu0
        %v506 = vadd.f32 %v339, %v505
        %v507 = vpop.f32.mrb[0].mxu0
        %v508 = vpop.f32.mrb[0].mxu0
        %509 = vdwg.mxu0
        %v510 = vpack.c.bf16 %v463, %v463
        %v511 = vpack.c.bf16 %v465, %v465
        %v512 = vpack.c.bf16 %v504, %v504
        %v513 = vpack.c.bf16 %v506, %v506
        %v514 = vtanh.bf16.pop %v510
        %v515 = vtanh.bf16.pop %v511
        %v516 = vtanh.bf16.pop %v512
        %v517 = vtanh.bf16.pop %v513
        %v518 = vld [vmem:[%s3] sm:$0xff]
        %v519 = vld [vmem:[%s3 + $0x8] sm:$0xff]
        %v520 = vld [vmem:[%s3 + $0x10] sm:$0xff]
        %v521 = vld [vmem:[%s3 + $0x18] sm:$0xff]
        %v522 = vld [vmem:[%s3 + $0x20] sm:$0xff]
        %v523 = vld [vmem:[%s3 + $0x28] sm:$0xff]
        %v524 = vld [vmem:[%s3 + $0x30] sm:$0xff]
        %v525 = vld [vmem:[%s3 + $0x38] sm:$0xff]
        %v526 = vld [vmem:[%s3 + $0x40] sm:$0xff]
        %v527 = vld [vmem:[%s3 + $0x48] sm:$0xff]
        %v528 = vld [vmem:[%s3 + $0x50] sm:$0xff]
        %v529 = vld [vmem:[%s3 + $0x58] sm:$0xff]
        %v530 = vld [vmem:[%s3 + $0x60] sm:$0xff]
        %v531 = vld [vmem:[%s3 + $0x68] sm:$0xff]
        %v532 = vld [vmem:[%s3 + $0x70] sm:$0xff]
        %v533 = vld [vmem:[%s3 + $0x78] sm:$0xff]
        %v534 = vld [vmem:[%s3 + $0x80] sm:$0xff]
        %v535 = vld [vmem:[%s3 + $0x88] sm:$0xff]
        %v536 = vld [vmem:[%s3 + $0x90] sm:$0xff]
        %v537 = vld [vmem:[%s3 + $0x98] sm:$0xff]
        %v538 = vld [vmem:[%s3 + $0xa0] sm:$0xff]
        %v539 = vld [vmem:[%s3 + $0xa8] sm:$0xff]
        %v540 = vld [vmem:[%s3 + $0xb0] sm:$0xff]
        %v541 = vld [vmem:[%s3 + $0xb8] sm:$0xff]
        %v542 = vld [vmem:[%s3 + $0xc0] sm:$0xff]
        %v543 = vld [vmem:[%s3 + $0xc8] sm:$0xff]
        %v544 = vld [vmem:[%s3 + $0xd0] sm:$0xff]
        %v545 = vld [vmem:[%s3 + $0xd8] sm:$0xff]
        %v546 = vld [vmem:[%s3 + $0xe0] sm:$0xff]
        %v547 = vld [vmem:[%s3 + $0xe8] sm:$0xff]
        %v548 = vld [vmem:[%s3 + $0xf0] sm:$0xff]
        %v549 = vld [vmem:[%s3 + $0xf8] sm:$0xff]
        %v582 = vunpack.c.l.b16 %v518
        %v583 = vunpack.c.h.b16 %v518
        %v584 = vunpack.c.l.b16 %v519
        %v585 = vunpack.c.h.b16 %v519
        %v586 = vunpack.c.l.b16 %v520
        %v587 = vunpack.c.h.b16 %v520
        %v588 = vunpack.c.l.b16 %v521
        %v589 = vunpack.c.h.b16 %v521
        %v590 = vunpack.c.l.b16 %v522
        %v591 = vunpack.c.h.b16 %v522
        %v592 = vunpack.c.l.b16 %v523
        %v593 = vunpack.c.h.b16 %v523
        %v594 = vunpack.c.l.b16 %v524
        %v595 = vunpack.c.h.b16 %v524
        %v596 = vunpack.c.l.b16 %v525
        %v597 = vunpack.c.h.b16 %v525
        %v598 = vunpack.c.l.b16 %v526
        %v599 = vunpack.c.h.b16 %v526
        %v600 = vunpack.c.l.b16 %v527
        %v601 = vunpack.c.h.b16 %v527
        %v602 = vunpack.c.l.b16 %v528
        %v603 = vunpack.c.h.b16 %v528
        %v604 = vunpack.c.l.b16 %v529
        %v605 = vunpack.c.h.b16 %v529
        %v606 = vunpack.c.l.b16 %v530
        %v607 = vunpack.c.h.b16 %v530
        %v608 = vunpack.c.l.b16 %v531
        %v609 = vunpack.c.h.b16 %v531
        %v610 = vunpack.c.l.b16 %v532
        %v611 = vunpack.c.h.b16 %v532
        %v612 = vunpack.c.l.b16 %v533
        %v613 = vunpack.c.h.b16 %v533
        %v614 = vunpack.c.l.b16 %v534
        %v615 = vunpack.c.h.b16 %v534
        %v616 = vunpack.c.l.b16 %v535
        %v617 = vunpack.c.h.b16 %v535
        %v618 = vunpack.c.l.b16 %v536
        %v619 = vunpack.c.h.b16 %v536
        %v620 = vunpack.c.l.b16 %v537
        %v621 = vunpack.c.h.b16 %v537
        %v622 = vunpack.c.l.b16 %v538
        %v623 = vunpack.c.h.b16 %v538
        %v624 = vunpack.c.l.b16 %v539
        %v625 = vunpack.c.h.b16 %v539
        %v626 = vunpack.c.l.b16 %v540
        %v627 = vunpack.c.h.b16 %v540
        %v628 = vunpack.c.l.b16 %v541
        %v629 = vunpack.c.h.b16 %v541
        %v630 = vunpack.c.l.b16 %v542
        %v631 = vunpack.c.h.b16 %v542
        %v632 = vunpack.c.l.b16 %v543
        %v633 = vunpack.c.h.b16 %v543
        %v634 = vunpack.c.l.b16 %v544
        %v635 = vunpack.c.h.b16 %v544
        %v636 = vunpack.c.l.b16 %v545
        %v637 = vunpack.c.h.b16 %v545
        %v638 = vunpack.c.l.b16 %v546
        %v639 = vunpack.c.h.b16 %v546
        %v640 = vunpack.c.l.b16 %v547
        %v641 = vunpack.c.h.b16 %v547
        %v642 = vunpack.c.l.b16 %v548
        %v643 = vunpack.c.h.b16 %v548
        %v644 = vunpack.c.l.b16 %v549
        %v645 = vunpack.c.h.b16 %v549
        %v646 = vpack.c.b16 %v584, %v582
        %v647 = vpack.c.b16 %v585, %v583
        %v648 = vpack.c.b16 %v588, %v586
        %v649 = vpack.c.b16 %v589, %v587
        %v650 = vpack.c.b16 %v592, %v590
        %v651 = vpack.c.b16 %v593, %v591
        %v652 = vpack.c.b16 %v596, %v594
        %v653 = vpack.c.b16 %v597, %v595
        %v654 = vpack.c.b16 %v600, %v598
        %v655 = vpack.c.b16 %v601, %v599
        %v656 = vpack.c.b16 %v604, %v602
        %v657 = vpack.c.b16 %v605, %v603
        %v658 = vpack.c.b16 %v608, %v606
        %v659 = vpack.c.b16 %v609, %v607
        %v660 = vpack.c.b16 %v612, %v610
        %v661 = vpack.c.b16 %v613, %v611
        %v662 = vpack.c.b16 %v616, %v614
        %v663 = vpack.c.b16 %v617, %v615
        %v664 = vpack.c.b16 %v620, %v618
        %v665 = vpack.c.b16 %v621, %v619
        %v666 = vpack.c.b16 %v624, %v622
        %v667 = vpack.c.b16 %v625, %v623
        %v668 = vpack.c.b16 %v628, %v626
        %v669 = vpack.c.b16 %v629, %v627
        %v670 = vpack.c.b16 %v632, %v630
        %v671 = vpack.c.b16 %v633, %v631
        %v672 = vpack.c.b16 %v636, %v634
        %v673 = vpack.c.b16 %v637, %v635
        %v674 = vpack.c.b16 %v640, %v638
        %v675 = vpack.c.b16 %v641, %v639
        %v676 = vpack.c.b16 %v644, %v642
        %v677 = vpack.c.b16 %v645, %v643
        %710 = vmatprep.subr.bf16.mxu0 %v647
        %711 = vmatpush1.bf16.msra.mxu0 %v646
        %712 = vmatprep.subr.bf16.mxu0 %v649
        %713 = vmatpush1.bf16.msra.mxu0 %v648
        %714 = vmatprep.subr.bf16.mxu0 %v651
        %715 = vmatpush1.bf16.msra.mxu0 %v650
        %716 = vmatprep.subr.bf16.mxu0 %v653
        %717 = vmatpush1.bf16.msra.mxu0 %v652
        %718 = vmatprep.subr.bf16.mxu0 %v655
        %719 = vmatpush1.bf16.msra.mxu0 %v654
        %720 = vmatprep.subr.bf16.mxu0 %v657
        %721 = vmatpush1.bf16.msra.mxu0 %v656
        %722 = vmatprep.subr.bf16.mxu0 %v659
        %723 = vmatpush1.bf16.msra.mxu0 %v658
        %724 = vmatprep.subr.bf16.mxu0 %v661
        %725 = vmatpush1.bf16.msra.mxu0 %v660
        %726 = vmatprep.subr.bf16.mxu0 %v663
        %727 = vmatpush1.bf16.msra.mxu0 %v662
        %728 = vmatprep.subr.bf16.mxu0 %v665
        %729 = vmatpush1.bf16.msra.mxu0 %v664
        %730 = vmatprep.subr.bf16.mxu0 %v667
        %731 = vmatpush1.bf16.msra.mxu0 %v666
        %732 = vmatprep.subr.bf16.mxu0 %v669
        %733 = vmatpush1.bf16.msra.mxu0 %v668
        %734 = vmatprep.subr.bf16.mxu0 %v671
        %735 = vmatpush1.bf16.msra.mxu0 %v670
        %736 = vmatprep.subr.bf16.mxu0 %v673
        %737 = vmatpush1.bf16.msra.mxu0 %v672
        %738 = vmatprep.subr.bf16.mxu0 %v675
        %739 = vmatpush1.bf16.msra.mxu0 %v674
        %740 = vmatprep.subr.bf16.mxu0 %v677
        %741 = vmatpush1.bf16.msra.mxu0 %v676
        %742 = vmatprep.mubr.bf16.mxu0 %v515
        %743 = vmatmul.mubr.bf16.gmra.mrb[0].mxu0 %v514
        %v744 = vpop.f32.mrb[0].mxu0
        %v745 = vadd.f32 0.0, %v744
        %v746 = vpop.f32.mrb[0].mxu0
        %v747 = vadd.f32 0.0, %v746
        %v748 = vpop.f32.mrb[0].mxu0
        %v749 = vpop.f32.mrb[0].mxu0
        %750 = vdwg.mxu0
        %751 = vmatprep.subr.bf16.mxu0 %v647
        %752 = vmatpush1.bf16.msra.mxu0 %v646
        %753 = vmatprep.subr.bf16.mxu0 %v649
        %754 = vmatpush1.bf16.msra.mxu0 %v648
        %755 = vmatprep.subr.bf16.mxu0 %v651
        %756 = vmatpush1.bf16.msra.mxu0 %v650
        %757 = vmatprep.subr.bf16.mxu0 %v653
        %758 = vmatpush1.bf16.msra.mxu0 %v652
        %759 = vmatprep.subr.bf16.mxu0 %v655
        %760 = vmatpush1.bf16.msra.mxu0 %v654
        %761 = vmatprep.subr.bf16.mxu0 %v657
        %762 = vmatpush1.bf16.msra.mxu0 %v656
        %763 = vmatprep.subr.bf16.mxu0 %v659
        %764 = vmatpush1.bf16.msra.mxu0 %v658
        %765 = vmatprep.subr.bf16.mxu0 %v661
        %766 = vmatpush1.bf16.msra.mxu0 %v660
        %767 = vmatprep.subr.bf16.mxu0 %v663
        %768 = vmatpush1.bf16.msra.mxu0 %v662
        %769 = vmatprep.subr.bf16.mxu0 %v665
        %770 = vmatpush1.bf16.msra.mxu0 %v664
        %771 = vmatprep.subr.bf16.mxu0 %v667
        %772 = vmatpush1.bf16.msra.mxu0 %v666
        %773 = vmatprep.subr.bf16.mxu0 %v669
        %774 = vmatpush1.bf16.msra.mxu0 %v668
        %775 = vmatprep.subr.bf16.mxu0 %v671
        %776 = vmatpush1.bf16.msra.mxu0 %v670
        %777 = vmatprep.subr.bf16.mxu0 %v673
        %778 = vmatpush1.bf16.msra.mxu0 %v672
        %779 = vmatprep.subr.bf16.mxu0 %v675
        %780 = vmatpush1.bf16.msra.mxu0 %v674
        %781 = vmatprep.subr.bf16.mxu0 %v677
        %782 = vmatpush1.bf16.msra.mxu0 %v676
        %783 = vmatprep.mubr.bf16.mxu0 %v517
        %784 = vmatmul.mubr.bf16.gmra.mrb[0].mxu0 %v516
        %v785 = vpop.f32.mrb[0].mxu0
        %v786 = vadd.f32 0.0, %v785
        %v787 = vpop.f32.mrb[0].mxu0
        %v788 = vadd.f32 0.0, %v787
        %v789 = vpop.f32.mrb[0].mxu0
        %v790 = vpop.f32.mrb[0].mxu0
        %791 = vdwg.mxu0
        %v792 = vld [vmem:[%s4] sm:$0xf]
        %v794 = vlaneseq
        %v795 = vshrl.u32 %v794, 7
        %v796 = vsub.s32 0, %v795
        %v797 = vrot.slane %v792, %v796
        %v798 = vlaneseq
        %v799 = vshrl.u32 %v798, 7
        %v800 = vsub.s32 1, %v799
        %v801 = vrot.slane %v792, %v800
        %v802 = vlaneseq
        %v803 = vshrl.u32 %v802, 7
        %v804 = vsub.s32 2, %v803
        %v805 = vrot.slane %v792, %v804
        %v806 = vlaneseq
        %v807 = vshrl.u32 %v806, 7
        %v808 = vsub.s32 3, %v807
        %v809 = vrot.slane %v792, %v808
        %v814 = vadd.f32 %v745, %v797
        %v815 = vadd.f32 %v747, %v801
        %v816 = vadd.f32 %v786, %v805
        %v817 = vadd.f32 %v788, %v809
        %v818 = vpack.c.bf16 %v814, %v814
        %v819 = vpack.c.bf16 %v815, %v815
        %v820 = vpack.c.bf16 %v816, %v816
        %v821 = vpack.c.bf16 %v817, %v817
        %v822 = vtanh.bf16.pop %v818
        %v823 = vtanh.bf16.pop %v819
        %v824 = vtanh.bf16.pop %v820
        %v825 = vtanh.bf16.pop %v821
        %v826 = vld [vmem:[#allocation4] sm:$0xf]
        %v827 = vld [vmem:[#allocation4 + $0x4] sm:$0xf]
        %v828 = vld [vmem:[#allocation4 + $0x8] sm:$0xf]
        %v829 = vld [vmem:[#allocation4 + $0xc] sm:$0xf]
        %v830 = vld [vmem:[#allocation4 + $0x10] sm:$0xf]
        %v831 = vld [vmem:[#allocation4 + $0x14] sm:$0xf]
        %v832 = vld [vmem:[#allocation4 + $0x18] sm:$0xf]
        %v833 = vld [vmem:[#allocation4 + $0x1c] sm:$0xf]
        %v834 = vld [vmem:[#allocation4 + $0x20] sm:$0xf]
        %v835 = vld [vmem:[#allocation4 + $0x24] sm:$0xf]
        %v836 = vld [vmem:[#allocation4 + $0x28] sm:$0xf]
        %v837 = vld [vmem:[#allocation4 + $0x2c] sm:$0xf]
        %v838 = vld [vmem:[#allocation4 + $0x30] sm:$0xf]
        %v839 = vld [vmem:[#allocation4 + $0x34] sm:$0xf]
        %v840 = vld [vmem:[#allocation4 + $0x38] sm:$0xf]
        %v841 = vld [vmem:[#allocation4 + $0x3c] sm:$0xf]
        %v842 = vld [vmem:[#allocation4 + $0x40] sm:$0xf]
        %v843 = vld [vmem:[#allocation4 + $0x44] sm:$0xf]
        %v844 = vld [vmem:[#allocation4 + $0x48] sm:$0xf]
        %v845 = vld [vmem:[#allocation4 + $0x4c] sm:$0xf]
        %v846 = vld [vmem:[#allocation4 + $0x50] sm:$0xf]
        %v847 = vld [vmem:[#allocation4 + $0x54] sm:$0xf]
        %v848 = vld [vmem:[#allocation4 + $0x58] sm:$0xf]
        %v849 = vld [vmem:[#allocation4 + $0x5c] sm:$0xf]
        %v850 = vld [vmem:[#allocation4 + $0x60] sm:$0xf]
        %v851 = vld [vmem:[#allocation4 + $0x64] sm:$0xf]
        %v852 = vld [vmem:[#allocation4 + $0x68] sm:$0xf]
        %v853 = vld [vmem:[#allocation4 + $0x6c] sm:$0xf]
        %v854 = vld [vmem:[#allocation4 + $0x70] sm:$0xf]
        %v855 = vld [vmem:[#allocation4 + $0x74] sm:$0xf]
        %v856 = vld [vmem:[#allocation4 + $0x78] sm:$0xf]
        %v857 = vld [vmem:[#allocation4 + $0x7c] sm:$0xf]
        %v858 = vld [vmem:[#allocation4 + $0x80] sm:$0xf]
        %v859 = vld [vmem:[#allocation4 + $0x84] sm:$0xf]
        %v860 = vld [vmem:[#allocation4 + $0x88] sm:$0xf]
        %v861 = vld [vmem:[#allocation4 + $0x8c] sm:$0xf]
        %v862 = vld [vmem:[#allocation4 + $0x90] sm:$0xf]
        %v863 = vld [vmem:[#allocation4 + $0x94] sm:$0xf]
        %v864 = vld [vmem:[#allocation4 + $0x98] sm:$0xf]
        %v865 = vld [vmem:[#allocation4 + $0x9c] sm:$0xf]
        %v866 = vld [vmem:[#allocation4 + $0xa0] sm:$0xf]
        %v867 = vld [vmem:[#allocation4 + $0xa4] sm:$0xf]
        %v868 = vld [vmem:[#allocation4 + $0xa8] sm:$0xf]
        %v869 = vld [vmem:[#allocation4 + $0xac] sm:$0xf]
        %v870 = vld [vmem:[#allocation4 + $0xb0] sm:$0xf]
        %v871 = vld [vmem:[#allocation4 + $0xb4] sm:$0xf]
        %v872 = vld [vmem:[#allocation4 + $0xb8] sm:$0xf]
        %v873 = vld [vmem:[#allocation4 + $0xbc] sm:$0xf]
        %v874 = vld [vmem:[#allocation4 + $0xc0] sm:$0xf]
        %v875 = vld [vmem:[#allocation4 + $0xc4] sm:$0xf]
        %v876 = vld [vmem:[#allocation4 + $0xc8] sm:$0xf]
        %v877 = vld [vmem:[#allocation4 + $0xcc] sm:$0xf]
        %v878 = vld [vmem:[#allocation4 + $0xd0] sm:$0xf]
        %v879 = vld [vmem:[#allocation4 + $0xd4] sm:$0xf]
        %v880 = vld [vmem:[#allocation4 + $0xd8] sm:$0xf]
        %v881 = vld [vmem:[#allocation4 + $0xdc] sm:$0xf]
        %v882 = vld [vmem:[#allocation4 + $0xe0] sm:$0xf]
        %v883 = vld [vmem:[#allocation4 + $0xe4] sm:$0xf]
        %v884 = vld [vmem:[#allocation4 + $0xe8] sm:$0xf]
        %v885 = vld [vmem:[#allocation4 + $0xec] sm:$0xf]
        %v886 = vld [vmem:[#allocation4 + $0xf0] sm:$0xf]
        %v887 = vld [vmem:[#allocation4 + $0xf4] sm:$0xf]
        %v888 = vld [vmem:[#allocation4 + $0xf8] sm:$0xf]
        %v889 = vld [vmem:[#allocation4 + $0xfc] sm:$0xf]
        %v890 = vld [vmem:[%s6] sm:$0x1]
        %v892 = vlaneseq
        %v893 = vshrl.u32 %v892, 7
        %v894 = vsub.s32 0, %v893
        %v895 = vrot.slane %v890, %v894
        %v961 = vunpack.c.l.b16 %v826
        %v962 = vunpack.c.l.b16 %v827
        %v963 = vunpack.c.l.b16 %v828
        %v964 = vunpack.c.l.b16 %v829
        %v965 = vunpack.c.l.b16 %v830
        %v966 = vunpack.c.l.b16 %v831
        %v967 = vunpack.c.l.b16 %v832
        %v968 = vunpack.c.l.b16 %v833
        %v969 = vunpack.c.l.b16 %v834
        %v970 = vunpack.c.l.b16 %v835
        %v971 = vunpack.c.l.b16 %v836
        %v972 = vunpack.c.l.b16 %v837
        %v973 = vunpack.c.l.b16 %v838
        %v974 = vunpack.c.l.b16 %v839
        %v975 = vunpack.c.l.b16 %v840
        %v976 = vunpack.c.l.b16 %v841
        %v977 = vunpack.c.l.b16 %v842
        %v978 = vunpack.c.l.b16 %v843
        %v979 = vunpack.c.l.b16 %v844
        %v980 = vunpack.c.l.b16 %v845
        %v981 = vunpack.c.l.b16 %v846
        %v982 = vunpack.c.l.b16 %v847
        %v983 = vunpack.c.l.b16 %v848
        %v984 = vunpack.c.l.b16 %v849
        %v985 = vunpack.c.l.b16 %v850
        %v986 = vunpack.c.l.b16 %v851
        %v987 = vunpack.c.l.b16 %v852
        %v988 = vunpack.c.l.b16 %v853
        %v989 = vunpack.c.l.b16 %v854
        %v990 = vunpack.c.l.b16 %v855
        %v991 = vunpack.c.l.b16 %v856
        %v992 = vunpack.c.l.b16 %v857
        %v993 = vunpack.c.l.b16 %v858
        %v994 = vunpack.c.l.b16 %v859
        %v995 = vunpack.c.l.b16 %v860
        %v996 = vunpack.c.l.b16 %v861
        %v997 = vunpack.c.l.b16 %v862
        %v998 = vunpack.c.l.b16 %v863
        %v999 = vunpack.c.l.b16 %v864
        %v1000 = vunpack.c.l.b16 %v865
        %v1001 = vunpack.c.l.b16 %v866
        %v1002 = vunpack.c.l.b16 %v867
        %v1003 = vunpack.c.l.b16 %v868
        %v1004 = vunpack.c.l.b16 %v869
        %v1005 = vunpack.c.l.b16 %v870
        %v1006 = vunpack.c.l.b16 %v871
        %v1007 = vunpack.c.l.b16 %v872
        %v1008 = vunpack.c.l.b16 %v873
        %v1009 = vunpack.c.l.b16 %v874
        %v1010 = vunpack.c.l.b16 %v875
        %v1011 = vunpack.c.l.b16 %v876
        %v1012 = vunpack.c.l.b16 %v877
        %v1013 = vunpack.c.l.b16 %v878
        %v1014 = vunpack.c.l.b16 %v879
        %v1015 = vunpack.c.l.b16 %v880
        %v1016 = vunpack.c.l.b16 %v881
        %v1017 = vunpack.c.l.b16 %v882
        %v1018 = vunpack.c.l.b16 %v883
        %v1019 = vunpack.c.l.b16 %v884
        %v1020 = vunpack.c.l.b16 %v885
        %v1021 = vunpack.c.l.b16 %v886
        %v1022 = vunpack.c.l.b16 %v887
        %v1023 = vunpack.c.l.b16 %v888
        %v1024 = vunpack.c.l.b16 %v889
        %v1025 = vpack.c.b16 %v962, %v961
        %v1026 = vpack.c.b16 %v964, %v963
        %v1027 = vpack.c.b16 %v966, %v965
        %v1028 = vpack.c.b16 %v968, %v967
        %v1029 = vpack.c.b16 %v970, %v969
        %v1030 = vpack.c.b16 %v972, %v971
        %v1031 = vpack.c.b16 %v974, %v973
        %v1032 = vpack.c.b16 %v976, %v975
        %v1033 = vpack.c.b16 %v978, %v977
        %v1034 = vpack.c.b16 %v980, %v979
        %v1035 = vpack.c.b16 %v982, %v981
        %v1036 = vpack.c.b16 %v984, %v983
        %v1037 = vpack.c.b16 %v986, %v985
        %v1038 = vpack.c.b16 %v988, %v987
        %v1039 = vpack.c.b16 %v990, %v989
        %v1040 = vpack.c.b16 %v992, %v991
        %v1041 = vpack.c.b16 %v994, %v993
        %v1042 = vpack.c.b16 %v996, %v995
        %v1043 = vpack.c.b16 %v998, %v997
        %v1044 = vpack.c.b16 %v1000, %v999
        %v1045 = vpack.c.b16 %v1002, %v1001
        %v1046 = vpack.c.b16 %v1004, %v1003
        %v1047 = vpack.c.b16 %v1006, %v1005
        %v1048 = vpack.c.b16 %v1008, %v1007
        %v1049 = vpack.c.b16 %v1010, %v1009
        %v1050 = vpack.c.b16 %v1012, %v1011
        %v1051 = vpack.c.b16 %v1014, %v1013
        %v1052 = vpack.c.b16 %v1016, %v1015
        %v1053 = vpack.c.b16 %v1018, %v1017
        %v1054 = vpack.c.b16 %v1020, %v1019
        %v1055 = vpack.c.b16 %v1022, %v1021
        %v1056 = vpack.c.b16 %v1024, %v1023
        %1089 = vmatprep.subr.bf16.mxu0 0
        %1090 = vmatpush1.bf16.msra.mxu0 %v1025
        %1091 = vmatprep.subr.bf16.mxu0 0
        %1092 = vmatpush1.bf16.msra.mxu0 %v1026
        %1093 = vmatprep.subr.bf16.mxu0 0
        %1094 = vmatpush1.bf16.msra.mxu0 %v1027
        %1095 = vmatprep.subr.bf16.mxu0 0
        %1096 = vmatpush1.bf16.msra.mxu0 %v1028
        %1097 = vmatprep.subr.bf16.mxu0 0
        %1098 = vmatpush1.bf16.msra.mxu0 %v1029
        %1099 = vmatprep.subr.bf16.mxu0 0
        %1100 = vmatpush1.bf16.msra.mxu0 %v1030
        %1101 = vmatprep.subr.bf16.mxu0 0
        %1102 = vmatpush1.bf16.msra.mxu0 %v1031
        %1103 = vmatprep.subr.bf16.mxu0 0
        %1104 = vmatpush1.bf16.msra.mxu0 %v1032
        %1105 = vmatprep.subr.bf16.mxu0 0
        %1106 = vmatpush1.bf16.msra.mxu0 %v1033
        %1107 = vmatprep.subr.bf16.mxu0 0
        %1108 = vmatpush1.bf16.msra.mxu0 %v1034
        %1109 = vmatprep.subr.bf16.mxu0 0
        %1110 = vmatpush1.bf16.msra.mxu0 %v1035
        %1111 = vmatprep.subr.bf16.mxu0 0
        %1112 = vmatpush1.bf16.msra.mxu0 %v1036
        %1113 = vmatprep.subr.bf16.mxu0 0
        %1114 = vmatpush1.bf16.msra.mxu0 %v1037
        %1115 = vmatprep.subr.bf16.mxu0 0
        %1116 = vmatpush1.bf16.msra.mxu0 %v1038
        %1117 = vmatprep.subr.bf16.mxu0 0
        %1118 = vmatpush1.bf16.msra.mxu0 %v1039
        %1119 = vmatprep.subr.bf16.mxu0 0
        %1120 = vmatpush1.bf16.msra.mxu0 %v1040
        %1121 = vmatprep.mubr.bf16.mxu0 %v823
        %1122 = vmatmul.mubr.bf16.gmra.mrb[0].mxu0 %v822
        %v1123 = vpop.f32.mrb[0].mxu0
        %v1124 = vadd.f32 %v895, %v1123
        %v1125 = vpop.f32.mrb[0].mxu0
        %v1126 = vpop.f32.mrb[0].mxu0
        %v1127 = vpop.f32.mrb[0].mxu0
        %1128 = vdwg.mxu0
        %1129 = vmatprep.subr.bf16.mxu0 0
        %1130 = vmatpush1.bf16.msra.mxu0 %v1041
        %1131 = vmatprep.subr.bf16.mxu0 0
        %1132 = vmatpush1.bf16.msra.mxu0 %v1042
        %1133 = vmatprep.subr.bf16.mxu0 0
        %1134 = vmatpush1.bf16.msra.mxu0 %v1043
        %1135 = vmatprep.subr.bf16.mxu0 0
        %1136 = vmatpush1.bf16.msra.mxu0 %v1044
        %1137 = vmatprep.subr.bf16.mxu0 0
        %1138 = vmatpush1.bf16.msra.mxu0 %v1045
        %1139 = vmatprep.subr.bf16.mxu0 0
        %1140 = vmatpush1.bf16.msra.mxu0 %v1046
        %1141 = vmatprep.subr.bf16.mxu0 0
        %1142 = vmatpush1.bf16.msra.mxu0 %v1047
        %1143 = vmatprep.subr.bf16.mxu0 0
        %1144 = vmatpush1.bf16.msra.mxu0 %v1048
        %1145 = vmatprep.subr.bf16.mxu0 0
        %1146 = vmatpush1.bf16.msra.mxu0 %v1049
        %1147 = vmatprep.subr.bf16.mxu0 0
        %1148 = vmatpush1.bf16.msra.mxu0 %v1050
        %1149 = vmatprep.subr.bf16.mxu0 0
        %1150 = vmatpush1.bf16.msra.mxu0 %v1051
        %1151 = vmatprep.subr.bf16.mxu0 0
        %1152 = vmatpush1.bf16.msra.mxu0 %v1052
        %1153 = vmatprep.subr.bf16.mxu0 0
        %1154 = vmatpush1.bf16.msra.mxu0 %v1053
        %1155 = vmatprep.subr.bf16.mxu0 0
        %1156 = vmatpush1.bf16.msra.mxu0 %v1054
        %1157 = vmatprep.subr.bf16.mxu0 0
        %1158 = vmatpush1.bf16.msra.mxu0 %v1055
        %1159 = vmatprep.subr.bf16.mxu0 0
        %1160 = vmatpush1.bf16.msra.mxu0 %v1056
        %1161 = vmatprep.mubr.bf16.mxu0 %v825
        %1162 = vmatmul.mubr.bf16.gmra.mrb[0].mxu0 %v824
        %v1163 = vpop.f32.mrb[0].mxu0
        %v1164 = vadd.f32 %v1124, %v1163
        %v1165 = vpop.f32.mrb[0].mxu0
        %v1166 = vpop.f32.mrb[0].mxu0
        %v1167 = vpop.f32.mrb[0].mxu0
        %1168 = vdwg.mxu0
        %1169 = vst [vmem:[%s303] sm:$0xff] %v1164
        %p1170 = scmp.lt.s32.totalorder %s20, 1
        %s1171 = scalar_select %p1170, %s20, 1
        %s1172 = smul.addr %s1171, 8
        %s1173 = scalar_lea.vmem %s7, %s1172
        // Predicated region
        $region57: #{mlp_forward.1} parent=47 // pred_check
          %p1174 = pneg %p190
        $region58: #{mlp_forward.1} parent=47 // pred_check_branch
          %1176 = sbr.rel (%p1174) target = $region60
        $region59: #{mlp_forward.1} parent=47 // pred_region
          _
        $region60: #{mlp_forward.1} parent=47 // pred_fallthru
          _
      $region48: #{mlp_forward.1} parent=5 // pred_fallthru
        _
      %p1177 = scmp.le.s32.totalorder 2, %s15
      // Predicated region
      $region61: #{mlp_forward.1} parent=5 // pred_check
        %p1178 = pneg %p1177
      $region62: #{mlp_forward.1} parent=5 // pred_check_branch
        %1180 = sbr.rel (%p1178) target = $region64
      $region63: #{mlp_forward.1} parent=5 // pred_region
        %s1181 = ssub.s32 %s15, 2
        // Predicated region
        $region65: #{mlp_forward.1} parent=63 // pred_check
          %p1182 = pneg %p196
        $region66: #{mlp_forward.1} parent=63 // pred_check_branch
          %1184 = sbr.rel (%p1182) target = $region68
        $region67: #{mlp_forward.1} parent=63 // pred_region
          %p1185 = scmp.lt.s32.totalorder %s21, 1
          %s1186 = scalar_select %p1185, %s21, 1
          %s1187 = smul.addr %s1186, 8
          %s1188 = scalar_lea.vmem %s7, %s1187
        $region68: #{mlp_forward.1} parent=63 // pred_fallthru
          _
      $region64: #{mlp_forward.1} parent=5 // pred_fallthru
        _
    $region6: #{mlp_forward.1} parent=1 // loop_footer
      %s19 = sadd.s32 1, %s15
    $region7: #{mlp_forward.1} parent=1 // loop_footer_branch
      %14 = sbr.rel target = $region3
    $region8: #{mlp_forward.1} parent=1 // loop_exit
      _
    %1189 = vsyncpa [#allocation3], 1
    %s1190 = scalar_lea.sflag [#allocation3], 1
    %1191 = vsyncpa %s1190, 1
    %1192 = vsyncpa [#allocation5], 1

</llo_original>
